<compile_context>
chip_gen: v7x
topology: tpu7x:2x2x1
jax: 0.10.0
libtpu: 0.0.40
codegen_flags: <defaults>
</compile_context>

<pallas_src>
import functools

import jax
import jax.numpy as jnp
from jax.experimental import pallas as pl
from jax.experimental.pallas import tpu as pltpu


def _round_up(x, m):
    return (x + m - 1) // m * m


def _decoder_block_kernel(x_ref, y_ref, w1_ref, b1_ref, w2_ref, b2_ref,
                          out_ref, acc_ref, *, bpb, cin, T, stride, R, W):
    # Per grid step:
    #   x_ref  : (bpb, Cin, T)      y_ref  : (bpb, H, T)     (T on lanes)
    #   w1_ref : (H, Cin)           b1_ref : (H, 1)
    #   w2_ref : (K_pad, H)         b2_ref : (1,)  in SMEM
    #   out_ref: (bpb, stride, W)   acc_ref: (stride, W) VMEM scratch canvas
    b2 = b2_ref[0]

    for bi in range(bpb):                                  # static, small (1 in the demo)
        x_b = x_ref[bi]                                    # (Cin, T)
        y_b = y_ref[bi]                                    # (H,  T)

        # ---- Conv1d(kernel_size=1) + bias + ReLU ----
        if cin <= 8:
            # tiny contraction depth: VPU broadcast-FMAs instead of the MXU
            m = b1_ref[...]                                # (H, 1), broadcasts over T
            for c in range(cin):                           # static small loop
                m = m + w1_ref[:, c:c + 1] * x_b[c:c + 1, :]
        else:
            m = jnp.dot(w1_ref[...], x_b,
                        preferred_element_type=jnp.float32) + b1_ref[...]
        m = jnp.maximum(m, 0.0)                            # (H, T)

        # ---- gating ----
        z = (y_b * m).astype(jnp.float32)                  # (H, T)

        # ---- ConvTranspose1d taps: single MXU matmul over the whole block ----
        f = jnp.dot(w2_ref[...], z,
                    preferred_element_type=jnp.float32)    # (K_pad, T)

        # ---- vectorized overlap-add: R = K_pad/stride shifted adds ----
        # canvas semantics: acc[s, j] == output sample j*stride + s
        acc_ref[...] = jnp.full((acc_ref.shape[0], W), b2, dtype=jnp.float32)
        for r in range(R):                                 # static, independent of T
            acc_ref[:, r:r + T] = acc_ref[:, r:r + T] + f[r * stride:(r + 1) * stride, :]

        # exactly one lane-dense store of the whole output block
        out_ref[bi] = acc_ref[...].astype(out_ref.dtype)


def decoder_block_forward(x_ncl, y_ncl, params, *, kernel_size, stride,
                          input_dtype=jnp.float32):
    """x_ncl: [B, Cin, T], y_ncl: [B, H, T] (PyTorch NCL layout)."""
    w1, b1, w2, b2 = params            # shapes: (H,Cin,1), (H,), (H,1,K), (1,)
    B, Cin, T = x_ncl.shape
    H = y_ncl.shape[1]
    K = kernel_size
    L = (T - 1) * stride + K

    K_pad = _round_up(K, stride)       # zero-pad taps so K_pad % stride == 0
    R = K_pad // stride                # number of shifted overlap-add copies
    W = _round_up(T + R - 1, 128)      # lane-dense output canvas width

    # Matmul-form weights (tiny, done once in XLA). Inputs keep NCL layout.
    w1_m = w1[:, :, 0].astype(jnp.float32)                           # (H, Cin)
    b1_c = b1.reshape(H, 1).astype(jnp.float32)                      # (H, 1)
    w2_k = jnp.transpose(w2[:, 0, :], (1, 0)).astype(jnp.float32)    # (K, H)
    if K_pad > K:
        w2_k = jnp.concatenate(
            [w2_k, jnp.zeros((K_pad - K, H), jnp.float32)], axis=0)  # (K_pad, H)
    b2_s = b2.reshape(1).astype(jnp.float32)                         # (1,) -> SMEM

    x = x_ncl.astype(input_dtype)      # bf16 here halves HBM traffic for large T
    y = y_ncl.astype(input_dtype)

    # 2-way parallel over batch when possible (both v7x TensorCores); else 1 step.
    G = 2 if (B % 2 == 0 and B >= 2) else 1
    bpb = B // G

    kernel = functools.partial(_decoder_block_kernel, bpb=bpb, cin=Cin, T=T,
                               stride=stride, R=R, W=W)

    out = pl.pallas_call(
        kernel,
        out_shape=jax.ShapeDtypeStruct((B, stride, W), jnp.float32),
        grid=(G,),
        in_specs=[
            pl.BlockSpec((bpb, Cin, T), lambda g: (g, 0, 0)),
            pl.BlockSpec((bpb, H, T), lambda g: (g, 0, 0)),
            pl.BlockSpec((H, Cin), lambda g: (0, 0)),
            pl.BlockSpec((H, 1), lambda g: (0, 0)),
            pl.BlockSpec((K_pad, H), lambda g: (0, 0)),
            pl.BlockSpec(memory_space=pltpu.MemorySpace.SMEM),   # b2 scalar
        ],
        out_specs=pl.BlockSpec((bpb, stride, W), lambda g: (g, 0, 0)),
        scratch_shapes=[pltpu.VMEM((stride, W), jnp.float32)],
        compiler_params=pltpu.CompilerParams(dimension_semantics=("parallel",)),
    )(x, y, w1_m, b1_c, w2_k, b2_s)

    # out[b, s, j] == S[b, j*stride + s]; un-block and trim lane padding (tiny XLA ops).
    S = jnp.transpose(out, (0, 2, 1)).reshape(B, W * stride)[:, :L]
    # PyTorch .squeeze(): (B,1,L) -> (B,L) (or (L,) if B == 1)
    return jnp.squeeze(S)


def _reference_forward(x_ncl, y_ncl, params, *, kernel_size, stride):
    """Pure-JAX reference replicating the PyTorch module."""
    w1, b1, w2, b2 = params
    B, Cin, T = x_ncl.shape
    K = kernel_size
    L = (T - 1) * stride + K
    M = jnp.einsum('hc,bct->bht', w1[:, :, 0], x_ncl) + b1[None, :, None]
    M = jnp.maximum(M, 0.0)
    Z = y_ncl * M                                                  # [B, H, T]
    S = jnp.full((B, L), b2[0], jnp.float32)
    for t in range(T):
        frame = jnp.einsum('bh,hk->bk', Z[:, :, t], w2[:, 0, :])
        S = S.at[:, t * stride:t * stride + K].add(frame)
    return jnp.squeeze(S)


if __name__ == "__main__":
    # module hyperparameters
    B, Cin, H, T = 2, 4, 32, 8
    kernel_size, stride = 8, 4

    # deterministic parameter init (synthetic, matches nn.Module shapes)
    kp = jax.random.PRNGKey(42)
    kw1, kb1, kw2, kb2 = jax.random.split(kp, 4)
    w1 = jax.random.normal(kw1, (H, Cin, 1), jnp.float32) * 0.1          # Conv1d weight
    b1 = jax.random.normal(kb1, (H,), jnp.float32) * 0.1                 # Conv1d bias
    w2 = jax.random.normal(kw2, (H, 1, kernel_size), jnp.float32) * 0.1  # ConvTranspose1d weight
    b2 = jax.random.normal(kb2, (1,), jnp.float32) * 0.1                 # ConvTranspose1d bias
    params = (w1, b1, w2, b2)

    # deterministic inputs (PyTorch NCL layout)
    kx, ky = jax.random.split(jax.random.PRNGKey(0))
    x = jax.random.normal(kx, (B, Cin, T), jnp.float32)
    Y = jax.random.normal(ky, (B, H, T), jnp.float32)

    out = decoder_block_forward(x, Y, params, kernel_size=kernel_size, stride=stride)
    out = jax.block_until_ready(out)

    ref = _reference_forward(x, Y, params, kernel_size=kernel_size, stride=stride)
    assert out.shape == ref.shape, (out.shape, ref.shape)
    assert jnp.allclose(out, ref, rtol=1e-3, atol=1e-3), float(jnp.max(jnp.abs(out - ref)))

    print("KERNEL_OK")
</pallas_src>

<mosaic_0001>
module attributes {stable_mosaic.version = 11 : i64} {
  func.func @_decoder_block_kernel(%arg0: i32, %arg1: memref<1x4x8xf32, #tpu.memory_space<vmem>>, %arg2: memref<1x32x8xf32, #tpu.memory_space<vmem>>, %arg3: memref<32x4xf32, #tpu.memory_space<vmem>>, %arg4: memref<32x1xf32, #tpu.memory_space<vmem>>, %arg5: memref<8x32xf32, #tpu.memory_space<vmem>>, %arg6: memref<1xf32, #tpu.memory_space<smem>>, %arg7: memref<1x4x128xf32, #tpu.memory_space<vmem>>, %arg8: memref<4x128xf32, #tpu.memory_space<vmem>>) attributes {dimension_semantics = [#tpu.dimension_semantics<parallel>], iteration_bounds = array<i64: 2>, scalar_prefetch = 0 : i64, scratch_operands = 1 : i64, tpu.core_type = #tpu.core_type<tc>, window_params = [{transform_indices = @transform_0, window_bounds = array<i64: 1, 4, 8>}, {transform_indices = @transform_1, window_bounds = array<i64: 1, 32, 8>}, {pipeline_mode = #tpu.pipeline_mode<synchronous>, transform_indices = @transform_2, window_bounds = array<i64: 32, 4>}, {pipeline_mode = #tpu.pipeline_mode<synchronous>, transform_indices = @transform_3, window_bounds = array<i64: 32, 1>}, {pipeline_mode = #tpu.pipeline_mode<synchronous>, transform_indices = @transform_4, window_bounds = array<i64: 8, 32>}, {transform_indices = @transform_5, window_bounds = array<i64: 1>}, {transform_indices = @transform_6, window_bounds = array<i64: 1, 4, 128>}]} {
    %c0 = arith.constant 0 : index
    %0 = memref.load %arg6[%c0] : memref<1xf32, #tpu.memory_space<smem>>
    %c0_0 = arith.constant 0 : index
    %c0_1 = arith.constant 0 : index
    %c0_2 = arith.constant 0 : index
    %1 = vector.load %arg1[%c0_0, %c0_1, %c0_2] : memref<1x4x8xf32, #tpu.memory_space<vmem>>, vector<1x4x8xf32>
    %2 = vector.shape_cast %1 : vector<1x4x8xf32> to vector<4x8xf32>
    %c0_3 = arith.constant 0 : index
    %c0_4 = arith.constant 0 : index
    %c0_5 = arith.constant 0 : index
    %3 = vector.load %arg2[%c0_3, %c0_4, %c0_5] : memref<1x32x8xf32, #tpu.memory_space<vmem>>, vector<1x32x8xf32>
    %4 = vector.shape_cast %3 : vector<1x32x8xf32> to vector<32x8xf32>
    %c0_6 = arith.constant 0 : index
    %c0_7 = arith.constant 0 : index
    %5 = vector.load %arg4[%c0_6, %c0_7] : memref<32x1xf32, #tpu.memory_space<vmem>>, vector<32x1xf32>
    %c0_8 = arith.constant 0 : index
    %c0_9 = arith.constant 0 : index
    %6 = vector.load %arg3[%c0_8, %c0_9] : memref<32x4xf32, #tpu.memory_space<vmem>>, vector<32x1xf32>
    %7 = vector.extract_strided_slice %2 {offsets = [0, 0], sizes = [1, 8], strides = [1, 1]} : vector<4x8xf32> to vector<1x8xf32>
    %8 = vector.broadcast %6 : vector<32x1xf32> to vector<32x8xf32>
    %9 = vector.broadcast %7 : vector<1x8xf32> to vector<32x8xf32>
    %10 = arith.mulf %8, %9 : vector<32x8xf32>
    %11 = vector.broadcast %5 : vector<32x1xf32> to vector<32x8xf32>
    %12 = arith.addf %11, %10 : vector<32x8xf32>
    %c0_10 = arith.constant 0 : index
    %c1 = arith.constant 1 : index
    %13 = vector.load %arg3[%c0_10, %c1] : memref<32x4xf32, #tpu.memory_space<vmem>>, vector<32x1xf32>
    %14 = vector.extract_strided_slice %2 {offsets = [1, 0], sizes = [1, 8], strides = [1, 1]} : vector<4x8xf32> to vector<1x8xf32>
    %15 = vector.broadcast %13 : vector<32x1xf32> to vector<32x8xf32>
    %16 = vector.broadcast %14 : vector<1x8xf32> to vector<32x8xf32>
    %17 = arith.mulf %15, %16 : vector<32x8xf32>
    %18 = arith.addf %12, %17 : vector<32x8xf32>
    %c0_11 = arith.constant 0 : index
    %c2 = arith.constant 2 : index
    %19 = vector.load %arg3[%c0_11, %c2] : memref<32x4xf32, #tpu.memory_space<vmem>>, vector<32x1xf32>
    %20 = vector.extract_strided_slice %2 {offsets = [2, 0], sizes = [1, 8], strides = [1, 1]} : vector<4x8xf32> to vector<1x8xf32>
    %21 = vector.broadcast %19 : vector<32x1xf32> to vector<32x8xf32>
    %22 = vector.broadcast %20 : vector<1x8xf32> to vector<32x8xf32>
    %23 = arith.mulf %21, %22 : vector<32x8xf32>
    %24 = arith.addf %18, %23 : vector<32x8xf32>
    %c0_12 = arith.constant 0 : index
    %c3 = arith.constant 3 : index
    %25 = vector.load %arg3[%c0_12, %c3] : memref<32x4xf32, #tpu.memory_space<vmem>>, vector<32x1xf32>
    %26 = vector.extract_strided_slice %2 {offsets = [3, 0], sizes = [1, 8], strides = [1, 1]} : vector<4x8xf32> to vector<1x8xf32>
    %27 = vector.broadcast %25 : vector<32x1xf32> to vector<32x8xf32>
    %28 = vector.broadcast %26 : vector<1x8xf32> to vector<32x8xf32>
    %29 = arith.mulf %27, %28 : vector<32x8xf32>
    %30 = arith.addf %24, %29 : vector<32x8xf32>
    %cst = arith.constant 0.000000e+00 : f32
    %31 = vector.broadcast %cst : f32 to vector<32x8xf32>
    %32 = arith.maximumf %30, %31 : vector<32x8xf32>
    %33 = arith.mulf %4, %32 : vector<32x8xf32>
    %c0_13 = arith.constant 0 : index
    %c0_14 = arith.constant 0 : index
    %34 = vector.load %arg5[%c0_13, %c0_14] : memref<8x32xf32, #tpu.memory_space<vmem>>, vector<8x32xf32>
    %cst_15 = arith.constant dense<0.000000e+00> : vector<8x8xf32>
    %35 = tpu.matmul %34, %33, %cst_15 {dimension_numbers = #tpu.dot_dimension_numbers<[1], [0], [0], [1], [0, 0, 1, 1], [], []>} : vector<8x32xf32>, vector<32x8xf32>, vector<8x8xf32> -> vector<8x8xf32>
    %36 = vector.broadcast %0 : f32 to vector<4x128xf32>
    %c0_16 = arith.constant 0 : index
    %c0_17 = arith.constant 0 : index
    %37 = vector.load %arg8[%c0_16, %c0_17] : memref<4x128xf32, #tpu.memory_space<vmem>>, vector<4x128xf32>
    tpu.vector_store %arg8[%c0_16, %c0_17], %36 {strides = array<i32>} : memref<4x128xf32, #tpu.memory_space<vmem>>, vector<4x128xf32>,
    %c0_18 = arith.constant 0 : index
    %c0_19 = arith.constant 0 : index
    %38 = vector.load %arg8[%c0_18, %c0_19] : memref<4x128xf32, #tpu.memory_space<vmem>>, vector<4x8xf32>
    %39 = vector.extract_strided_slice %35 {offsets = [0, 0], sizes = [4, 8], strides = [1, 1]} : vector<8x8xf32> to vector<4x8xf32>
    %40 = arith.addf %38, %39 : vector<4x8xf32>
    %c0_20 = arith.constant 0 : index
    %c0_21 = arith.constant 0 : index
    %41 = vector.load %arg8[%c0_20, %c0_21] : memref<4x128xf32, #tpu.memory_space<vmem>>, vector<4x8xf32>
    tpu.vector_store %arg8[%c0_20, %c0_21], %40 {strides = array<i32>} : memref<4x128xf32, #tpu.memory_space<vmem>>, vector<4x8xf32>,
    %c0_22 = arith.constant 0 : index
    %c1_23 = arith.constant 1 : index
    %42 = vector.load %arg8[%c0_22, %c1_23] : memref<4x128xf32, #tpu.memory_space<vmem>>, vector<4x8xf32>
    %43 = vector.extract_strided_slice %35 {offsets = [4, 0], sizes = [4, 8], strides = [1, 1]} : vector<8x8xf32> to vector<4x8xf32>
    %44 = arith.addf %42, %43 : vector<4x8xf32>
    %c0_24 = arith.constant 0 : index
    %c1_25 = arith.constant 1 : index
    %45 = vector.load %arg8[%c0_24, %c1_25] : memref<4x128xf32, #tpu.memory_space<vmem>>, vector<4x8xf32>
    tpu.vector_store %arg8[%c0_24, %c1_25], %44 {strides = array<i32>} : memref<4x128xf32, #tpu.memory_space<vmem>>, vector<4x8xf32>,
    %c0_26 = arith.constant 0 : index
    %c0_27 = arith.constant 0 : index
    %46 = vector.load %arg8[%c0_26, %c0_27] : memref<4x128xf32, #tpu.memory_space<vmem>>, vector<4x128xf32>
    %c0_28 = arith.constant 0 : index
    %c0_29 = arith.constant 0 : index
    %c0_30 = arith.constant 0 : index
    %47 = vector.load %arg7[%c0_28, %c0_29, %c0_30] : memref<1x4x128xf32, #tpu.memory_space<vmem>>, vector<1x4x128xf32>
    %48 = vector.shape_cast %47 : vector<1x4x128xf32> to vector<4x128xf32>
    %49 = vector.shape_cast %46 : vector<4x128xf32> to vector<1x4x128xf32>
    tpu.vector_store %arg7[%c0_28, %c0_29, %c0_30], %49 {strides = array<i32>} : memref<1x4x128xf32, #tpu.memory_space<vmem>>, vector<1x4x128xf32>,
    return
  }
  func.func @transform_0(%arg0: i32) -> (i32, i32, i32) {
    %c0_i32 = arith.constant 0 : i32
    %c0_i32_0 = arith.constant 0 : i32
    %c0_i32_1 = arith.constant 0 : i32
    return %arg0, %c0_i32, %c0_i32_0 : i32, i32, i32
  }
  func.func @transform_1(%arg0: i32) -> (i32, i32, i32) {
    %c0_i32 = arith.constant 0 : i32
    %c0_i32_0 = arith.constant 0 : i32
    %c0_i32_1 = arith.constant 0 : i32
    return %arg0, %c0_i32, %c0_i32_0 : i32, i32, i32
  }
  func.func @transform_2(%arg0: i32) -> (i32, i32) {
    %c0_i32 = arith.constant 0 : i32
    %c0_i32_0 = arith.constant 0 : i32
    %c0_i32_1 = arith.constant 0 : i32
    return %c0_i32, %c0_i32_0 : i32, i32
  }
  func.func @transform_3(%arg0: i32) -> (i32, i32) {
    %c0_i32 = arith.constant 0 : i32
    %c0_i32_0 = arith.constant 0 : i32
    %c0_i32_1 = arith.constant 0 : i32
    return %c0_i32, %c0_i32_0 : i32, i32
  }
  func.func @transform_4(%arg0: i32) -> (i32, i32) {
    %c0_i32 = arith.constant 0 : i32
    %c0_i32_0 = arith.constant 0 : i32
    %c0_i32_1 = arith.constant 0 : i32
    return %c0_i32, %c0_i32_0 : i32, i32
  }
  func.func @transform_5(%arg0: i32) -> i32 {
    %c0_i32 = arith.constant 0 : i32
    %c0_i32_0 = arith.constant 0 : i32
    return %c0_i32 : i32
  }
  func.func @transform_6(%arg0: i32) -> (i32, i32, i32) {
    %c0_i32 = arith.constant 0 : i32
    %c0_i32_0 = arith.constant 0 : i32
    %c0_i32_1 = arith.constant 0 : i32
    return %arg0, %c0_i32, %c0_i32_0 : i32, i32, i32
  }
}

</mosaic_0001>

<llo_original>
// kernel: tpu_custom_call.1
$region0: #{tpu_custom_call.1}
  #allocation0 [shape = 'u32[]', space=smem, size = 0x4, offset = 0x4, fixed_abs, tag = 'smem constant byte address 0x4 - core index']
  #allocation1 [shape = 'u32[144,128]{1,0:T(1,128)}', space=vmem, size = 0x12000, scoped, tag = 'internal scratch']
  #allocation2 [shape = 'f32[4,128]{1,0:T(4,128)}', space=vmem, size = 0x800, scoped, tag = 'scratch operand']
  #allocation3 [shape = 'f32[1]{0:T(128)S(6)}', space=smem, size = 0x200, scoped, tag = 'scoped memory for tpu_custom_call.1']
  %s0 = inlined_call_operand.vmem [shape: f32[2,4,8], index: 0, kind: input, shape index: {}]
  %s1 = inlined_call_operand.vmem [shape: f32[2,32,8], index: 1, kind: input, shape index: {}]
  %s2 = inlined_call_operand.vmem [shape: f32[32,4], index: 2, kind: input, shape index: {}]
  %s3 = inlined_call_operand.vmem [shape: f32[32,1], index: 3, kind: input, shape index: {}]
  %s4 = inlined_call_operand.vmem [shape: f32[8,32], index: 4, kind: input, shape index: {}]
  %s5 = inlined_call_operand.<no memory space> [shape: f32[1], index: 5, kind: input, shape index: {}]
  %s6 = inlined_call_operand.hbm [shape: f32[2,4,128], index: 6, kind: output, shape index: {}]
  %s7 = sld [smem:[#allocation0]]
  $region57: #{tpu_custom_call.1} parent=0
    _
  %s9 = ssub.s32 1, %s7
  %s10 = scalar_select 0, %s9, %s7
  %11 = sst [smem:[#allocation3]] %s5
  $region1: #{tpu_custom_call.1} parent=0
    #allocation4 [shape = 'u8[4096]{0}', space=vmem, size = 0x1000, scoped, tag = 'output window, operand 0']
    #allocation5 [shape = 's32[2]{0}', space=sflag, size = 0x8, scoped, tag = 'scoped memory for tpu_custom_call.1']
    %12 = vsyncpa [#allocation5], 0
    %s13 = scalar_lea.sflag [#allocation5], 1
    %14 = vsyncpa %s13, 0
    loop: start=0, step=1, limit=4
    $region2: #{tpu_custom_call.1} parent=1 // loop_pre_header
      _
    $region3: #{tpu_custom_call.1} parent=1 // loop_header
      %s16 = sphi 0, %s20
      %p17 = scmp.ge.s32.totalorder %s16, 4
      %s26 = sphi 0, %s28
      %s29 = sphi 0, %s26
      %s30 = sphi 0, %s29
      %s46 = sphi 0, %s30
      %s52 = sphi 0, %s54
      %s55 = sphi 0, %s52
      %s56 = sphi 0, %s55
      %s72 = sphi 0, %s56
      %s76 = sphi 0, %s76
      %s78 = sphi 0, %s76
      %s79 = sphi 0, %s78
      %s93 = sphi 0, %s79
      %s97 = sphi 0, %s97
      %s99 = sphi 0, %s97
      %s100 = sphi 0, %s99
      %s114 = sphi 0, %s100
      %s118 = sphi 0, %s118
      %s120 = sphi 0, %s118
      %s121 = sphi 0, %s120
      %s135 = sphi 0, %s121
      %s139 = sphi 0, %s139
      %s141 = sphi 0, %s139
      %s142 = sphi 0, %s141
      %s156 = sphi 0, %s142
      %s162 = sphi 0, %s164
      %s165 = sphi 0, %s162
      %s166 = sphi 0, %s165
      %s182 = sphi 0, %s166
    $region4: #{tpu_custom_call.1} parent=1 // loop_header_branch
      %19 = sbr.rel (%p17) target = $region8
    $region5: #{tpu_custom_call.1} parent=1 // loop_body
      %s21 = ssub.s32 %s16, 1
      %s22 = ssub.s32 %s16, 2
      %s23 = sadd.s32 %s16, 1
      %s24 = ssub.s32 %s16, %s23
      %p25 = scmp.eq.s32.totalorder %s24, 0
      %s27 = sadd.s32 %s26, 1
      %s28 = scalar_select %p25, %s26, %s27
      %p31 = pneg %p25
      %p32 = scmp.eq.s32.totalorder %s16, 1
      %p33 = por %p31, %p32
      %p34 = scmp.ne.s32.totalorder %s26, %s29
      %p35 = scmp.eq.s32.totalorder %s16, 0
      %p36 = por %p34, %p35
      %p37 = scmp.ne.s32.totalorder %s26, %s29
      %p38 = scmp.eq.s32.totalorder %s21, 1
      %p39 = por %p37, %p38
      %p40 = scmp.ne.s32.totalorder %s29, %s30
      %p41 = scmp.eq.s32.totalorder %s21, 0
      %p42 = por %p40, %p41
      %p43 = scmp.ne.s32.totalorder %s29, %s30
      %p44 = scmp.eq.s32.totalorder %s22, 1
      %p45 = por %p43, %p44
      %p47 = scmp.ne.s32.totalorder %s30, %s46
      %p48 = scmp.eq.s32.totalorder %s22, 0
      %p49 = por %p47, %p48
      %s50 = ssub.s32 %s16, %s23
      %p51 = scmp.eq.s32.totalorder %s50, 0
      %s53 = sadd.s32 %s52, 1
      %s54 = scalar_select %p51, %s52, %s53
      %p57 = pneg %p51
      %p58 = scmp.eq.s32.totalorder %s16, 1
      %p59 = por %p57, %p58
      %p60 = scmp.ne.s32.totalorder %s52, %s55
      %p61 = scmp.eq.s32.totalorder %s16, 0
      %p62 = por %p60, %p61
      %p63 = scmp.ne.s32.totalorder %s52, %s55
      %p64 = scmp.eq.s32.totalorder %s21, 1
      %p65 = por %p63, %p64
      %p66 = scmp.ne.s32.totalorder %s55, %s56
      %p67 = scmp.eq.s32.totalorder %s21, 0
      %p68 = por %p66, %p67
      %p69 = scmp.ne.s32.totalorder %s55, %s56
      %p70 = scmp.eq.s32.totalorder %s22, 1
      %p71 = por %p69, %p70
      %p73 = scmp.ne.s32.totalorder %s56, %s72
      %p74 = scmp.eq.s32.totalorder %s22, 0
      %p75 = por %p73, %p74
      %s77 = sadd.s32 %s76, 1
      %p80 = scmp.eq.s32.totalorder %s16, 1
      %p81 = scmp.ne.s32.totalorder %s76, %s78
      %p82 = scmp.eq.s32.totalorder %s16, 0
      %p83 = por %p81, %p82
      %p84 = scmp.ne.s32.totalorder %s76, %s78
      %p85 = scmp.eq.s32.totalorder %s21, 1
      %p86 = por %p84, %p85
      %p87 = scmp.ne.s32.totalorder %s78, %s79
      %p88 = scmp.eq.s32.totalorder %s21, 0
      %p89 = por %p87, %p88
      %p90 = scmp.ne.s32.totalorder %s78, %s79
      %p91 = scmp.eq.s32.totalorder %s22, 1
      %p92 = por %p90, %p91
      %p94 = scmp.ne.s32.totalorder %s79, %s93
      %p95 = scmp.eq.s32.totalorder %s22, 0
      %p96 = por %p94, %p95
      %s98 = sadd.s32 %s97, 1
      %p101 = scmp.eq.s32.totalorder %s16, 1
      %p102 = scmp.ne.s32.totalorder %s97, %s99
      %p103 = scmp.eq.s32.totalorder %s16, 0
      %p104 = por %p102, %p103
      %p105 = scmp.ne.s32.totalorder %s97, %s99
      %p106 = scmp.eq.s32.totalorder %s21, 1
      %p107 = por %p105, %p106
      %p108 = scmp.ne.s32.totalorder %s99, %s100
      %p109 = scmp.eq.s32.totalorder %s21, 0
      %p110 = por %p108, %p109
      %p111 = scmp.ne.s32.totalorder %s99, %s100
      %p112 = scmp.eq.s32.totalorder %s22, 1
      %p113 = por %p111, %p112
      %p115 = scmp.ne.s32.totalorder %s100, %s114
      %p116 = scmp.eq.s32.totalorder %s22, 0
      %p117 = por %p115, %p116
      %s119 = sadd.s32 %s118, 1
      %p122 = scmp.eq.s32.totalorder %s16, 1
      %p123 = scmp.ne.s32.totalorder %s118, %s120
      %p124 = scmp.eq.s32.totalorder %s16, 0
      %p125 = por %p123, %p124
      %p126 = scmp.ne.s32.totalorder %s118, %s120
      %p127 = scmp.eq.s32.totalorder %s21, 1
      %p128 = por %p126, %p127
      %p129 = scmp.ne.s32.totalorder %s120, %s121
      %p130 = scmp.eq.s32.totalorder %s21, 0
      %p131 = por %p129, %p130
      %p132 = scmp.ne.s32.totalorder %s120, %s121
      %p133 = scmp.eq.s32.totalorder %s22, 1
      %p134 = por %p132, %p133
      %p136 = scmp.ne.s32.totalorder %s121, %s135
      %p137 = scmp.eq.s32.totalorder %s22, 0
      %p138 = por %p136, %p137
      %s140 = sadd.s32 %s139, 1
      %p143 = scmp.eq.s32.totalorder %s16, 1
      %p144 = scmp.ne.s32.totalorder %s139, %s141
      %p145 = scmp.eq.s32.totalorder %s16, 0
      %p146 = por %p144, %p145
      %p147 = scmp.ne.s32.totalorder %s139, %s141
      %p148 = scmp.eq.s32.totalorder %s21, 1
      %p149 = por %p147, %p148
      %p150 = scmp.ne.s32.totalorder %s141, %s142
      %p151 = scmp.eq.s32.totalorder %s21, 0
      %p152 = por %p150, %p151
      %p153 = scmp.ne.s32.totalorder %s141, %s142
      %p154 = scmp.eq.s32.totalorder %s22, 1
      %p155 = por %p153, %p154
      %p157 = scmp.ne.s32.totalorder %s142, %s156
      %p158 = scmp.eq.s32.totalorder %s22, 0
      %p159 = por %p157, %p158
      %s160 = ssub.s32 %s16, %s23
      %p161 = scmp.eq.s32.totalorder %s160, 0
      %s163 = sadd.s32 %s162, 1
      %s164 = scalar_select %p161, %s162, %s163
      %p167 = pneg %p161
      %p168 = scmp.eq.s32.totalorder %s16, 1
      %p169 = por %p167, %p168
      %p170 = scmp.ne.s32.totalorder %s162, %s165
      %p171 = scmp.eq.s32.totalorder %s16, 0
      %p172 = por %p170, %p171
      %p173 = scmp.ne.s32.totalorder %s162, %s165
      %p174 = scmp.eq.s32.totalorder %s21, 1
      %p175 = por %p173, %p174
      %p176 = scmp.ne.s32.totalorder %s165, %s166
      %p177 = scmp.eq.s32.totalorder %s21, 0
      %p178 = por %p176, %p177
      %p179 = scmp.ne.s32.totalorder %s165, %s166
      %p180 = scmp.eq.s32.totalorder %s22, 1
      %p181 = por %p179, %p180
      %p183 = scmp.ne.s32.totalorder %s166, %s182
      %p184 = scmp.eq.s32.totalorder %s22, 0
      %p185 = por %p183, %p184
      %p186 = scmp.le.s32.totalorder 1, %s16
      %p187 = scmp.lt.s32.totalorder %s16, 3
      %p188 = pnand %p186, %p187
      %p189 = pneg %p188
      // Predicated region
      $region9: #{tpu_custom_call.1} parent=5 // pred_check
        _
      $region10: #{tpu_custom_call.1} parent=5 // pred_check_branch
        %191 = sbr.rel (%p188) target = $region12
      $region11: #{tpu_custom_call.1} parent=5 // pred_region
        %s192 = ssub.s32 %s16, 1
        // Predicated region
        $region13: #{tpu_custom_call.1} parent=11 // pred_check
          %p193 = pneg %p89
        $region14: #{tpu_custom_call.1} parent=11 // pred_check_branch
          %195 = sbr.rel (%p193) target = $region16
        $region15: #{tpu_custom_call.1} parent=11 // pred_region
          _
        $region16: #{tpu_custom_call.1} parent=11 // pred_fallthru
          _
        // Predicated region
        $region17: #{tpu_custom_call.1} parent=11 // pred_check
          %p196 = pneg %p110
        $region18: #{tpu_custom_call.1} parent=11 // pred_check_branch
          %198 = sbr.rel (%p196) target = $region20
        $region19: #{tpu_custom_call.1} parent=11 // pred_region
          _
        $region20: #{tpu_custom_call.1} parent=11 // pred_fallthru
          _
        // Predicated region
        $region21: #{tpu_custom_call.1} parent=11 // pred_check
          %p199 = pneg %p131
        $region22: #{tpu_custom_call.1} parent=11 // pred_check_branch
          %201 = sbr.rel (%p199) target = $region24
        $region23: #{tpu_custom_call.1} parent=11 // pred_region
          _
        $region24: #{tpu_custom_call.1} parent=11 // pred_fallthru
          _
        // Predicated region
        $region25: #{tpu_custom_call.1} parent=11 // pred_check
          %p202 = pneg %p152
        $region26: #{tpu_custom_call.1} parent=11 // pred_check_branch
          %204 = sbr.rel (%p202) target = $region28
        $region27: #{tpu_custom_call.1} parent=11 // pred_region
          _
        $region28: #{tpu_custom_call.1} parent=11 // pred_fallthru
          _
      $region12: #{tpu_custom_call.1} parent=5 // pred_fallthru
        _
      %p205 = scmp.lt.s32.totalorder %s16, 2
      // Predicated region
      $region29: #{tpu_custom_call.1} parent=5 // pred_check
        %p206 = pneg %p205
      $region30: #{tpu_custom_call.1} parent=5 // pred_check_branch
        %208 = sbr.rel (%p206) target = $region32
      $region31: #{tpu_custom_call.1} parent=5 // pred_region
        // Predicated region
        $region33: #{tpu_custom_call.1} parent=31 // pred_check
          %p209 = pneg %p36
        $region34: #{tpu_custom_call.1} parent=31 // pred_check_branch
          %211 = sbr.rel (%p209) target = $region36
        $region35: #{tpu_custom_call.1} parent=31 // pred_region
          %p212 = scmp.lt.s32.totalorder %s16, 1
          %s213 = scalar_select %p212, %s16, 1
          %s214 = smul.addr %s213, 4
          %s215 = scalar_lea.vmem %s0, %s214
        $region36: #{tpu_custom_call.1} parent=31 // pred_fallthru
          _
        // Predicated region
        $region37: #{tpu_custom_call.1} parent=31 // pred_check
          %p216 = pneg %p62
        $region38: #{tpu_custom_call.1} parent=31 // pred_check_branch
          %218 = sbr.rel (%p216) target = $region40
        $region39: #{tpu_custom_call.1} parent=31 // pred_region
          %p219 = scmp.lt.s32.totalorder %s16, 1
          %s220 = scalar_select %p219, %s16, 1
          %s221 = smul.addr %s220, 4
          %s222 = smul.addr %s221, 8
          %s223 = scalar_lea.vmem %s1, %s222
        $region40: #{tpu_custom_call.1} parent=31 // pred_fallthru
          _
      $region32: #{tpu_custom_call.1} parent=5 // pred_fallthru
        _
      %p224 = scmp.le.s32.totalorder 1, %s16
      %p225 = scmp.lt.s32.totalorder %s16, 3
      %p226 = pnand %p224, %p225
      %p227 = pneg %p226
      // Predicated region
      $region41: #{tpu_custom_call.1} parent=5 // pred_check
        _
      $region42: #{tpu_custom_call.1} parent=5 // pred_check_branch
        %229 = sbr.rel (%p226) target = $region44
      $region43: #{tpu_custom_call.1} parent=5 // pred_region
        %s230 = ssub.s32 %s16, 1
        %p231 = scmp.lt.s32.totalorder %s21, 1
        %s232 = scalar_select %p231, %s21, 1
        %s233 = smul.addr %s232, 4
        %s234 = scalar_lea.vmem %s0, %s233
        %p235 = pneg %p42
        %p236 = pneg %p39
        %p237 = scmp.lt.s32.totalorder %s21, 1
        %s238 = scalar_select %p237, %s21, 1
        %s239 = smul.addr %s238, 4
        %s240 = smul.addr %s239, 8
        %s241 = scalar_lea.vmem %s1, %s240
        %p242 = pneg %p68
        %p243 = pneg %p65
        %p244 = pneg %p89
        %p245 = pneg %p86
        %p246 = pneg %p110
        %p247 = pneg %p107
        %p248 = pneg %p131
        %p249 = pneg %p128
        %p250 = pneg %p152
        %p251 = pneg %p149
        %p252 = pneg %p178
        %p253 = pneg %p175
        %s254 = sand.u32 %s165, 1
        %s255 = scalar_lea.sflag [#allocation5], %s254
        %s256 = sand.u32 %s165, 1
        %s257 = smul.addr %s256, 4
        %s258 = scalar_lea.vmem [#allocation4], %s257
        %p259 = scmp.lt.s32.totalorder %s21, 1
        %s260 = scalar_select %p259, %s21, 1
        %s261 = smul.addr %s260, 4
        %s262 = scalar_lea.vmem %s0, %s261
        %p263 = scmp.lt.s32.totalorder %s21, 1
        %s264 = scalar_select %p263, %s21, 1
        %s265 = smul.addr %s264, 4
        %s266 = smul.addr %s265, 8
        %s267 = scalar_lea.vmem %s1, %s266
        %s268 = sld [smem:[#allocation3]]
        %v269 = vld [vmem:[%s262] sm:$0xf]
        %v270 = vld [vmem:[%s267] sm:$0xff]
        %v271 = vld [vmem:[%s267 + $0x8] sm:$0xff]
        %v272 = vld [vmem:[%s267 + $0x10] sm:$0xff]
        %v273 = vld [vmem:[%s267 + $0x18] sm:$0xff]
        %v274 = vld [vmem:[%s3] sm:$0xff]
        %v275 = vld [vmem:[%s3 + $0x8] sm:$0xff]
        %v276 = vld [vmem:[%s3 + $0x10] sm:$0xff]
        %v277 = vld [vmem:[%s3 + $0x18] sm:$0xff]
        %v278 = vld [vmem:[%s2] sm:$0xff]
        %v279 = vld [vmem:[%s2 + $0x8] sm:$0xff]
        %v280 = vld [vmem:[%s2 + $0x10] sm:$0xff]
        %v281 = vld [vmem:[%s2 + $0x18] sm:$0xff]
        %283 = vset.pattern.permute.xlu0 0
        %284 = vperm.xlu0 %283, %v278
        %v285 = vpop.permute.xlu0 %284
        %288 = vset.pattern.permute.xlu0 0
        %289 = vperm.xlu0 %288, %v279
        %v290 = vpop.permute.xlu0 %289
        %293 = vset.pattern.permute.xlu0 0
        %294 = vperm.xlu0 %293, %v280
        %v295 = vpop.permute.xlu0 %294
        %298 = vset.pattern.permute.xlu0 0
        %299 = vperm.xlu0 %298, %v281
        %v300 = vpop.permute.xlu0 %299
        %v302 = vlaneseq
        %v303 = vshrl.u32 %v302, 7
        %v304 = vsub.s32 0, %v303
        %v305 = vrot.slane %v269, %v304
        %v306 = vmul.f32 %v285, %v305
        %v307 = vmul.f32 %v290, %v305
        %v308 = vmul.f32 %v295, %v305
        %v309 = vmul.f32 %v300, %v305
        %311 = vset.pattern.permute.xlu0 0
        %312 = vperm.xlu0 %311, %v274
        %v313 = vpop.permute.xlu0 %312
        %316 = vset.pattern.permute.xlu0 0
        %317 = vperm.xlu0 %316, %v275
        %v318 = vpop.permute.xlu0 %317
        %321 = vset.pattern.permute.xlu0 0
        %322 = vperm.xlu0 %321, %v276
        %v323 = vpop.permute.xlu0 %322
        %326 = vset.pattern.permute.xlu0 0
        %327 = vperm.xlu0 %326, %v277
        %v328 = vpop.permute.xlu0 %327
        %v330 = vadd.f32 %v313, %v306
        %v331 = vadd.f32 %v318, %v307
        %v332 = vadd.f32 %v323, %v308
        %v333 = vadd.f32 %v328, %v309
        %334 = vset.pattern.permute.xlu0 1
        %335 = vperm.xlu0 %334, %v278
        %v336 = vpop.permute.xlu0 %335
        %338 = vset.pattern.permute.xlu0 1
        %339 = vperm.xlu0 %338, %v279
        %v340 = vpop.permute.xlu0 %339
        %342 = vset.pattern.permute.xlu0 1
        %343 = vperm.xlu0 %342, %v280
        %v344 = vpop.permute.xlu0 %343
        %346 = vset.pattern.permute.xlu0 1
        %347 = vperm.xlu0 %346, %v281
        %v348 = vpop.permute.xlu0 %347
        %v350 = vlaneseq
        %v351 = vshrl.u32 %v350, 7
        %v352 = vsub.s32 1, %v351
        %v353 = vrot.slane %v269, %v352
        %v354 = vmul.f32 %v336, %v353
        %v355 = vmul.f32 %v340, %v353
        %v356 = vmul.f32 %v344, %v353
        %v357 = vmul.f32 %v348, %v353
        %v358 = vadd.f32 %v330, %v354
        %v359 = vadd.f32 %v331, %v355
        %v360 = vadd.f32 %v332, %v356
        %v361 = vadd.f32 %v333, %v357
        %362 = vset.pattern.permute.xlu0 2
        %363 = vperm.xlu0 %362, %v278
        %v364 = vpop.permute.xlu0 %363
        %366 = vset.pattern.permute.xlu0 2
        %367 = vperm.xlu0 %366, %v279
        %v368 = vpop.permute.xlu0 %367
        %370 = vset.pattern.permute.xlu0 2
        %371 = vperm.xlu0 %370, %v280
        %v372 = vpop.permute.xlu0 %371
        %374 = vset.pattern.permute.xlu0 2
        %375 = vperm.xlu0 %374, %v281
        %v376 = vpop.permute.xlu0 %375
        %v378 = vlaneseq
        %v379 = vshrl.u32 %v378, 7
        %v380 = vsub.s32 2, %v379
        %v381 = vrot.slane %v269, %v380
        %v382 = vmul.f32 %v364, %v381
        %v383 = vmul.f32 %v368, %v381
        %v384 = vmul.f32 %v372, %v381
        %v385 = vmul.f32 %v376, %v381
        %v386 = vadd.f32 %v358, %v382
        %v387 = vadd.f32 %v359, %v383
        %v388 = vadd.f32 %v360, %v384
        %v389 = vadd.f32 %v361, %v385
        %390 = vset.pattern.permute.xlu0 3
        %391 = vperm.xlu0 %390, %v278
        %v392 = vpop.permute.xlu0 %391
        %394 = vset.pattern.permute.xlu0 3
        %395 = vperm.xlu0 %394, %v279
        %v396 = vpop.permute.xlu0 %395
        %398 = vset.pattern.permute.xlu0 3
        %399 = vperm.xlu0 %398, %v280
        %v400 = vpop.permute.xlu0 %399
        %402 = vset.pattern.permute.xlu0 3
        %403 = vperm.xlu0 %402, %v281
        %v404 = vpop.permute.xlu0 %403
        %v406 = vlaneseq
        %v407 = vshrl.u32 %v406, 7
        %v408 = vsub.s32 3, %v407
        %v409 = vrot.slane %v269, %v408
        %v410 = vmul.f32 %v392, %v409
        %v411 = vmul.f32 %v396, %v409
        %v412 = vmul.f32 %v400, %v409
        %v413 = vmul.f32 %v404, %v409
        %v414 = vadd.f32 %v386, %v410
        %v415 = vadd.f32 %v387, %v411
        %v416 = vadd.f32 %v388, %v412
        %v417 = vadd.f32 %v389, %v413
        %v418 = vmax.f32 %v414, 0.0
        %v419 = vmax.f32 %v415, 0.0
        %v420 = vmax.f32 %v416, 0.0
        %v421 = vmax.f32 %v417, 0.0
        %v422 = vmul.f32 %v270, %v418
        %v423 = vmul.f32 %v271, %v419
        %v424 = vmul.f32 %v272, %v420
        %v425 = vmul.f32 %v273, %v421
        %v426 = vld [vmem:[%s4] sm:$0xff]
        %vm427 = vcmask 261120
        %v429 = vsel %vm427, %v426, 0
        %431 = vmatprep.subr.mxu0 0.0
        %432 = vmatpush1.msra.mxu0 %v422
        %433 = vmatprep.subr.mxu0 0.0
        %434 = vmatpush1.msra.mxu0 %v423
        %435 = vmatprep.subr.mxu0 0.0
        %436 = vmatpush1.msra.mxu0 %v424
        %437 = vmatprep.subr.mxu0 0.0
        %438 = vmatpush1.msra.mxu0 %v425
        %439 = vmatprep.subr.mxu0 0.0
        %440 = vmatpush1.msra.mxu0 0.0
        %441 = vmatprep.subr.mxu0 0.0
        %442 = vmatpush1.msra.mxu0 0.0
        %443 = vmatprep.subr.mxu0 0.0
        %444 = vmatpush1.msra.mxu0 0.0
        %445 = vmatprep.subr.mxu0 0.0
        %446 = vmatpush1.msra.mxu0 0.0
        %447 = vmatprep.subr.mxu0 0.0
        %448 = vmatpush1.msra.mxu0 0.0
        %449 = vmatprep.subr.mxu0 0.0
        %450 = vmatpush1.msra.mxu0 0.0
        %451 = vmatprep.subr.mxu0 0.0
        %452 = vmatpush1.msra.mxu0 0.0
        %453 = vmatprep.subr.mxu0 0.0
        %454 = vmatpush1.msra.mxu0 0.0
        %455 = vmatprep.subr.mxu0 0.0
        %456 = vmatpush1.msra.mxu0 0.0
        %457 = vmatprep.subr.mxu0 0.0
        %458 = vmatpush1.msra.mxu0 0.0
        %459 = vmatprep.subr.mxu0 0.0
        %460 = vmatpush1.msra.mxu0 0.0
        %461 = vmatprep.subr.mxu0 0.0
        %462 = vmatpush1.msra.mxu0 0.0
        %463 = vmatprep.subr.mxu0 0.0
        %464 = vmatpush1.msra.mxu0 0.0
        %465 = vmatprep.subr.mxu0 0.0
        %466 = vmatpush1.msra.mxu0 0.0
        %467 = vmatprep.subr.mxu0 0.0
        %468 = vmatpush1.msra.mxu0 0.0
        %469 = vmatprep.subr.mxu0 0.0
        %470 = vmatpush1.msra.mxu0 0.0
        %471 = vmatprep.subr.mxu0 0.0
        %472 = vmatpush1.msra.mxu0 0.0
        %473 = vmatprep.subr.mxu0 0.0
        %474 = vmatpush1.msra.mxu0 0.0
        %475 = vmatprep.subr.mxu0 0.0
        %476 = vmatpush1.msra.mxu0 0.0
        %477 = vmatprep.subr.mxu0 0.0
        %478 = vmatpush1.msra.mxu0 0.0
        %479 = vmatprep.subr.mxu0 0.0
        %480 = vmatpush1.msra.mxu0 0.0
        %481 = vmatprep.subr.mxu0 0.0
        %482 = vmatpush1.msra.mxu0 0.0
        %483 = vmatprep.subr.mxu0 0.0
        %484 = vmatpush1.msra.mxu0 0.0
        %485 = vmatprep.subr.mxu0 0.0
        %486 = vmatpush1.msra.mxu0 0.0
        %487 = vmatprep.subr.mxu0 0.0
        %488 = vmatpush1.msra.mxu0 0.0
        %489 = vmatprep.subr.mxu0 0.0
        %490 = vmatpush1.msra.mxu0 0.0
        %491 = vmatprep.subr.mxu0 0.0
        %492 = vmatpush1.msra.mxu0 0.0
        %493 = vmatprep.subr.mxu0 0.0
        %494 = vmatpush1.msra.mxu0 0.0
        %495 = vmatprep.mubr.f32.mxu0 0.0
        %496 = vmatmul.mubr.f32.gmra.mrb[0].mxu0 %v429
        %v497 = vpop.f32.mrb[0].mxu0
        %v498 = vadd.f32 0.0, %v497
        %v499 = vpop.f32.mrb[0].mxu0
        %500 = vdwg.mxu0
        %v501 = vstv %s268
        %502 = vst [vmem:[#allocation2] sm:$0xf] %v501
        %v503 = vld [vmem:[#allocation2] sm:$0xf]
        %v504 = vadd.f32 %v503, %v498
        %vm505 = vcmask 60416
        %506 = vst.msk [vmem:[#allocation2] sm:$0xf] %vm505, %v504
        %v507 = vld [vmem:[#allocation2] sm:$0xf]
        %v509 = vrot.slane %v498, 4
        %510 = vrot.lane.b32.xlu0 %v509, 1
        %v511 = vpop.permute.xlu0 %510
        %v513 = vadd.f32 %v507, %v511
        %vm514 = vcmask 68616
        %515 = vst.msk [vmem:[#allocation2] sm:$0xf] %vm514, %v513
        %v516 = vld [vmem:[#allocation2] sm:$0xf]
        %517 = vst [vmem:[%s258] sm:$0xf] %v516
        %s518 = sand.u32 %s165, 1
        %s519 = scalar_lea.sflag [#allocation5], %s518
        %s520 = sand.u32 %s165, 1
        %s521 = smul.addr %s520, 4
        %s522 = scalar_lea.vmem [#allocation4], %s521
        // Predicated region
        $region45: #{tpu_custom_call.1} parent=43 // pred_check
          %p523 = pneg %p175
        $region46: #{tpu_custom_call.1} parent=43 // pred_check_branch
          %525 = sbr.rel (%p523) target = $region48
        $region47: #{tpu_custom_call.1} parent=43 // pred_region
          %s527 = ssub.s32 64, 64
          %528 = vsyncadd %s519, %s527
          %s529 = smul.addr %s21, 64
          %s530 = scalar_lea.hbm %s6, %s529
          %s532 = sshll.u32 %s522, 4
          %s533 = int_to_ptr.vmem [resolvable:$true] %s532
          %535 = dma.vmem_to_hbm [thread:$0]  %s533, 64, %s530, %s519
        $region48: #{tpu_custom_call.1} parent=43 // pred_fallthru
          _
      $region44: #{tpu_custom_call.1} parent=5 // pred_fallthru
        _
      %p536 = scmp.le.s32.totalorder 2, %s16
      // Predicated region
      $region49: #{tpu_custom_call.1} parent=5 // pred_check
        %p537 = pneg %p536
      $region50: #{tpu_custom_call.1} parent=5 // pred_check_branch
        %539 = sbr.rel (%p537) target = $region52
      $region51: #{tpu_custom_call.1} parent=5 // pred_region
        %s540 = ssub.s32 %s16, 2
        // Predicated region
        $region53: #{tpu_custom_call.1} parent=51 // pred_check
          %p541 = pneg %p181
        $region54: #{tpu_custom_call.1} parent=51 // pred_check_branch
          %543 = sbr.rel (%p541) target = $region56
        $region55: #{tpu_custom_call.1} parent=51 // pred_region
          %s544 = sand.u32 %s166, 1
          %s545 = scalar_lea.sflag [#allocation5], %s544
          %s546 = sand.u32 %s166, 1
          %s547 = smul.addr %s546, 4
          %s548 = scalar_lea.vmem [#allocation4], %s547
          %549 = dma.done %s545, 64
        $region56: #{tpu_custom_call.1} parent=51 // pred_fallthru
          _
      $region52: #{tpu_custom_call.1} parent=5 // pred_fallthru
        _
    $region6: #{tpu_custom_call.1} parent=1 // loop_footer
      %s20 = sadd.s32 1, %s16
    $region7: #{tpu_custom_call.1} parent=1 // loop_footer_branch
      %15 = sbr.rel target = $region3
    $region8: #{tpu_custom_call.1} parent=1 // loop_exit
      _
    %550 = vsyncpa [#allocation5], 1
    %s551 = scalar_lea.sflag [#allocation5], 1
    %552 = vsyncpa %s551, 1

</llo_original>
